<compile_context>
chip_gen: v7x
topology: tpu7x:2x2x1
jax: 0.10.0
libtpu: 0.0.40
codegen_flags: <defaults>
</compile_context>

<pallas_src>
import functools

import jax
import jax.numpy as jnp
from jax.experimental import pallas as pl
from jax.experimental.pallas import tpu as pltpu


def _cwd_kernel(s_ref, t_ref, o_ref, acc_ref, *, inv_tau):
    """One (tile_r, L) row tile: per-row KL(softmax_T || softmax_S) over the
    lane (spatial) axis, summed and accumulated in a VMEM scratch scalar."""

    @pl.when(pl.program_id(1) == 0)
    def _():
        acc_ref[...] = jnp.zeros_like(acc_ref)

    t = t_ref[...].astype(jnp.float32) * inv_tau
    s = s_ref[...].astype(jnp.float32) * inv_tau

    # Row-wise max-shift for numerical stability (XLU cross-lane reductions).
    t_max = jnp.max(t, axis=-1, keepdims=True)
    s_max = jnp.max(s, axis=-1, keepdims=True)
    t_shift = t - t_max
    s_shift = s - s_max

    # Two exps per element (EUP); row sums on the XLU.
    t_exp = jnp.exp(t_shift)
    t_sum = jnp.sum(t_exp, axis=-1, keepdims=True)
    s_sum = jnp.sum(jnp.exp(s_shift), axis=-1, keepdims=True)

    # F.kl_div(log_softmax_s, softmax_t, size_average=False) per row:
    #   sum_j p_j * (log p_j - log q_j)
    #     = (1/t_sum) * sum_j t_exp_j * (t_shift_j - s_shift_j)
    #       + log(s_sum) - log(t_sum)        (since sum_j p_j == 1)
    # The only full-tile work is one subtract, one multiply and a row sum.
    row_dot = jnp.sum(t_exp * (t_shift - s_shift), axis=-1, keepdims=True)
    row_kl = row_dot / t_sum + jnp.log(s_sum) - jnp.log(t_sum)
    acc_ref[...] += jnp.sum(row_kl)

    # Write the per-split partial sum once, at the last reduction step.
    @pl.when(pl.program_id(1) == pl.num_programs(1) - 1)
    def _():
        o_ref[0] = acc_ref[...]


def channel_wise_divergence(preds_S, preds_T, tau=4.0, loss_weight=3.0,
                            n_splits=2):
    """Pallas implementation of ChannelWiseDivergence.forward (align=None,
    matching spatial sizes)."""
    assert preds_S.shape == preds_T.shape, (
        "expect matching shapes (interpolate branch not implemented)")
    N, C, W, H = preds_S.shape
    R, L = N * C, W * H

    # Flatten to (N*C, W*H) — pure reshape glue.
    s2 = preds_S.reshape(R, L)
    t2 = preds_T.reshape(R, L)

    itemsize = jnp.dtype(preds_S.dtype).itemsize
    row_align = max(8, 32 // itemsize)          # 8 rows for f32, 16 for bf16

    # Collapse the parallel split for tiny inputs (avoids pointless padding).
    n_splits = max(1, min(n_splits, R // row_align)) if R >= row_align else 1

    # --- tile sizing: biggest VMEM-fitting row tile (HBM-bound kernel). ---
    # Footprint per row of tile: 2 inputs x 2 pipeline buffers x L x itemsize.
    vmem_budget = 32 * 1024 * 1024              # fits v5e/v6e (128 MiB) and v7x (64 MiB)
    per_row_bytes = 2 * 2 * L * itemsize
    tile_r = max(row_align, min(512, vmem_budget // per_row_bytes))
    tile_r -= tile_r % row_align
    # No point tiling beyond what one split owns.
    rows_per_split = -(-R // n_splits)
    rows_per_split = -(-rows_per_split // row_align) * row_align
    tile_r = max(row_align, min(tile_r, rows_per_split))

    # Zero-pad rows to a multiple of (n_splits * tile_r): identical zero rows
    # in S and T contribute exactly 0 to the KL, so no masking is needed.
    chunk = n_splits * tile_r
    R_pad = -(-R // chunk) * chunk
    if R_pad != R:
        pad = R_pad - R
        s2 = jnp.pad(s2, ((0, pad), (0, 0)))
        t2 = jnp.pad(t2, ((0, pad), (0, 0)))

    inner = R_pad // chunk                      # reduction steps per split
    grid = (n_splits, inner)

    scale = loss_weight * (tau ** 2) / (C * N)

    # Raise the scoped VMEM limit to cover the double-buffered input tiles.
    buf_bytes = 2 * 2 * tile_r * L * itemsize
    vmem_limit = int(min(48 * 1024 * 1024,
                         max(16 * 1024 * 1024, buf_bytes + 8 * 1024 * 1024)))

    out = pl.pallas_call(
        functools.partial(_cwd_kernel, inv_tau=float(1.0 / tau)),
        out_shape=jax.ShapeDtypeStruct((n_splits, 1, 1), jnp.float32),
        grid_spec=pltpu.PrefetchScalarGridSpec(
            num_scalar_prefetch=0,
            grid=grid,
            in_specs=[
                pl.BlockSpec((tile_r, L), lambda i, j: (i * inner + j, 0)),
                pl.BlockSpec((tile_r, L), lambda i, j: (i * inner + j, 0)),
            ],
            out_specs=pl.BlockSpec((1, 1, 1), lambda i, j: (i, 0, 0)),
            scratch_shapes=[pltpu.VMEM((1, 1), jnp.float32)],
        ),
        compiler_params=pltpu.CompilerParams(
            # Outer row-split axis is parallel (uses both v7x TensorCores);
            # inner axis is the running-sum reduction.
            dimension_semantics=("parallel", "arbitrary"),
            vmem_limit_bytes=vmem_limit,
        ),
    )(s2, t2)

    # Sum the per-split partials and apply the loss scale once.
    return out.sum() * scale


def _reference(preds_S, preds_T, tau=4.0, loss_weight=3.0):
    """Pure-JAX reference mirroring the PyTorch forward."""
    N, C, W, H = preds_S.shape
    s = preds_S.reshape(-1, W * H).astype(jnp.float32) / tau
    t = preds_T.reshape(-1, W * H).astype(jnp.float32) / tau
    softmax_t = jax.nn.softmax(t, axis=1)
    logsoftmax_s = jax.nn.log_softmax(s, axis=1)
    logsoftmax_t = jax.nn.log_softmax(t, axis=1)
    kl = jnp.sum(softmax_t * (logsoftmax_t - logsoftmax_s))
    return loss_weight * kl * (tau ** 2) / (C * N)


if __name__ == "__main__":
    key = jax.random.PRNGKey(0)
    k_s, k_t = jax.random.split(key)

    N, C, W, H = 2, 4, 16, 16  # student_channels == teacher_channels == 4
    preds_S = jax.random.normal(k_s, (N, C, W, H), dtype=jnp.float32)
    preds_T = jax.random.normal(k_t, (N, C, W, H), dtype=jnp.float32)

    loss = channel_wise_divergence(preds_S, preds_T, tau=4.0, loss_weight=3.0)
    loss = jax.block_until_ready(loss)

    ref = _reference(preds_S, preds_T, tau=4.0, loss_weight=3.0)
    assert jnp.allclose(loss, ref, rtol=1e-3, atol=1e-5), (loss, ref)

    print("KERNEL_OK")
</pallas_src>

<mosaic_0001>
module attributes {stable_mosaic.version = 11 : i64} {
  func.func @_cwd_kernel(%arg0: i32, %arg1: i32, %arg2: memref<8x256xf32, #tpu.memory_space<vmem>>, %arg3: memref<8x256xf32, #tpu.memory_space<vmem>>, %arg4: memref<1x1x1xf32, #tpu.memory_space<vmem>>, %arg5: memref<1x1xf32, #tpu.memory_space<vmem>>) attributes {dimension_semantics = [#tpu.dimension_semantics<parallel>, #tpu.dimension_semantics<arbitrary>], iteration_bounds = array<i64: 1, 1>, scalar_prefetch = 0 : i64, scratch_operands = 1 : i64, tpu.core_type = #tpu.core_type<tc>, window_params = [{transform_indices = @transform_0, window_bounds = array<i64: 8, 256>}, {transform_indices = @transform_1, window_bounds = array<i64: 8, 256>}, {transform_indices = @transform_2, window_bounds = array<i64: 1, 1, 1>}]} {
    %c0_i32 = arith.constant 0 : i32
    %0 = arith.cmpi eq, %arg1, %c0_i32 : i32
    %1 = arith.extui %0 : i1 to i32
    %c0_i32_0 = arith.constant 0 : i32
    %2 = arith.cmpi ne, %1, %c0_i32_0 : i32
    scf.if %2 {
      %cst_17 = arith.constant 0.000000e+00 : f32
      %43 = vector.broadcast %cst_17 : f32 to vector<1x1xf32>
      %c0_18 = arith.constant 0 : index
      %c0_19 = arith.constant 0 : index
      %44 = vector.load %arg5[%c0_18, %c0_19] : memref<1x1xf32, #tpu.memory_space<vmem>>, vector<1x1xf32>
      tpu.vector_store %arg5[%c0_18, %c0_19], %43 {strides = array<i32>} : memref<1x1xf32, #tpu.memory_space<vmem>>, vector<1x1xf32>,
    } else {
    }
    %c0 = arith.constant 0 : index
    %c0_1 = arith.constant 0 : index
    %3 = vector.load %arg3[%c0, %c0_1] : memref<8x256xf32, #tpu.memory_space<vmem>>, vector<8x256xf32>
    %cst = arith.constant 2.500000e-01 : f32
    %4 = vector.broadcast %cst : f32 to vector<8x256xf32>
    %5 = arith.mulf %3, %4 : vector<8x256xf32>
    %c0_2 = arith.constant 0 : index
    %c0_3 = arith.constant 0 : index
    %6 = vector.load %arg2[%c0_2, %c0_3] : memref<8x256xf32, #tpu.memory_space<vmem>>, vector<8x256xf32>
    %cst_4 = arith.constant 2.500000e-01 : f32
    %7 = vector.broadcast %cst_4 : f32 to vector<8x256xf32>
    %8 = arith.mulf %6, %7 : vector<8x256xf32>
    %cst_5 = arith.constant dense<0xFF800000> : vector<8xf32>
    %9 = vector.multi_reduction <maximumf>, %5, %cst_5 [1] : vector<8x256xf32> to vector<8xf32>
    %10 = vector.shape_cast %9 : vector<8xf32> to vector<8x1xf32>
    %cst_6 = arith.constant dense<0xFF800000> : vector<8xf32>
    %11 = vector.multi_reduction <maximumf>, %8, %cst_6 [1] : vector<8x256xf32> to vector<8xf32>
    %12 = vector.shape_cast %11 : vector<8xf32> to vector<8x1xf32>
    %13 = vector.broadcast %10 : vector<8x1xf32> to vector<8x256xf32>
    %14 = arith.subf %5, %13 : vector<8x256xf32>
    %15 = vector.broadcast %12 : vector<8x1xf32> to vector<8x256xf32>
    %16 = arith.subf %8, %15 : vector<8x256xf32>
    %17 = math.exp %14 : vector<8x256xf32>
    %cst_7 = arith.constant dense<0.000000e+00> : vector<8xf32>
    %18 = vector.multi_reduction <add>, %17, %cst_7 [1] : vector<8x256xf32> to vector<8xf32>
    %19 = vector.shape_cast %18 : vector<8xf32> to vector<8x1xf32>
    %20 = math.exp %16 : vector<8x256xf32>
    %cst_8 = arith.constant dense<0.000000e+00> : vector<8xf32>
    %21 = vector.multi_reduction <add>, %20, %cst_8 [1] : vector<8x256xf32> to vector<8xf32>
    %22 = vector.shape_cast %21 : vector<8xf32> to vector<8x1xf32>
    %23 = arith.subf %14, %16 : vector<8x256xf32>
    %24 = arith.mulf %17, %23 : vector<8x256xf32>
    %cst_9 = arith.constant dense<0.000000e+00> : vector<8xf32>
    %25 = vector.multi_reduction <add>, %24, %cst_9 [1] : vector<8x256xf32> to vector<8xf32>
    %26 = vector.shape_cast %25 : vector<8xf32> to vector<8x1xf32>
    %27 = arith.divf %26, %19 : vector<8x1xf32>
    %28 = math.log %22 : vector<8x1xf32>
    %29 = arith.addf %27, %28 : vector<8x1xf32>
    %30 = math.log %19 : vector<8x1xf32>
    %31 = arith.subf %29, %30 : vector<8x1xf32>
    %c0_10 = arith.constant 0 : index
    %c0_11 = arith.constant 0 : index
    %32 = vector.load %arg5[%c0_10, %c0_11] : memref<1x1xf32, #tpu.memory_space<vmem>>, vector<1x1xf32>
    %33 = vector.shape_cast %31 : vector<8x1xf32> to vector<1x8x1xf32>
    %cst_12 = arith.constant dense<0.000000e+00> : vector<1xf32>
    %34 = vector.multi_reduction <add>, %33, %cst_12 [1, 2] : vector<1x8x1xf32> to vector<1xf32>
    %35 = vector.shape_cast %34 : vector<1xf32> to vector<1x1x1xf32>
    %36 = vector.extract %35[0, 0, 0] : f32 from vector<1x1x1xf32>
    %37 = vector.broadcast %36 : f32 to vector<1x1xf32>
    %38 = arith.addf %32, %37 : vector<1x1xf32>
    %c0_13 = arith.constant 0 : index
    %c0_14 = arith.constant 0 : index
    %39 = vector.load %arg5[%c0_13, %c0_14] : memref<1x1xf32, #tpu.memory_space<vmem>>, vector<1x1xf32>
    tpu.vector_store %arg5[%c0_13, %c0_14], %38 {strides = array<i32>} : memref<1x1xf32, #tpu.memory_space<vmem>>, vector<1x1xf32>,
    %c0_i32_15 = arith.constant 0 : i32
    %40 = arith.cmpi eq, %arg1, %c0_i32_15 : i32
    %41 = arith.extui %40 : i1 to i32
    %c0_i32_16 = arith.constant 0 : i32
    %42 = arith.cmpi ne, %41, %c0_i32_16 : i32
    scf.if %42 {
      %c0_17 = arith.constant 0 : index
      %c0_18 = arith.constant 0 : index
      %43 = vector.load %arg5[%c0_17, %c0_18] : memref<1x1xf32, #tpu.memory_space<vmem>>, vector<1x1xf32>
      %c0_19 = arith.constant 0 : index
      %c0_20 = arith.constant 0 : index
      %c0_21 = arith.constant 0 : index
      %44 = vector.load %arg4[%c0_19, %c0_20, %c0_21] : memref<1x1x1xf32, #tpu.memory_space<vmem>>, vector<1x1x1xf32>
      %45 = vector.shape_cast %44 : vector<1x1x1xf32> to vector<1x1xf32>
      %46 = vector.shape_cast %43 : vector<1x1xf32> to vector<1x1x1xf32>
      tpu.vector_store %arg4[%c0_19, %c0_20, %c0_21], %46 {strides = array<i32>} : memref<1x1x1xf32, #tpu.memory_space<vmem>>, vector<1x1x1xf32>,
    } else {
    }
    return
  }
  func.func @transform_0(%arg0: i32, %arg1: i32) -> (i32, i32) {
    %c1_i32 = arith.constant 1 : i32
    %0 = arith.muli %arg0, %c1_i32 : i32
    %1 = arith.addi %0, %arg1 : i32
    %c0_i32 = arith.constant 0 : i32
    %c0_i32_0 = arith.constant 0 : i32
    return %1, %c0_i32 : i32, i32
  }
  func.func @transform_1(%arg0: i32, %arg1: i32) -> (i32, i32) {
    %c1_i32 = arith.constant 1 : i32
    %0 = arith.muli %arg0, %c1_i32 : i32
    %1 = arith.addi %0, %arg1 : i32
    %c0_i32 = arith.constant 0 : i32
    %c0_i32_0 = arith.constant 0 : i32
    return %1, %c0_i32 : i32, i32
  }
  func.func @transform_2(%arg0: i32, %arg1: i32) -> (i32, i32, i32) {
    %c0_i32 = arith.constant 0 : i32
    %c0_i32_0 = arith.constant 0 : i32
    %c0_i32_1 = arith.constant 0 : i32
    return %arg0, %c0_i32, %c0_i32_0 : i32, i32, i32
  }
}

</mosaic_0001>

<llo_original>
// kernel: tpu_custom_call.1
$region0: #{tpu_custom_call.1}
  #allocation0 [shape = 'u32[]', space=smem, size = 0x4, offset = 0x4, fixed_abs, tag = 'smem constant byte address 0x4 - core index']
  #allocation1 [shape = 'u32[144,128]{1,0:T(1,128)}', space=vmem, size = 0x12000, scoped, tag = 'internal scratch']
  #allocation2 [shape = 'f32[1,1]{1,0:T(1,128)}', space=vmem, size = 0x200, scoped, tag = 'scratch operand']
  %s0 = inlined_call_operand.hbm [shape: f32[8,256], index: 0, kind: input, shape index: {}]
  %s1 = inlined_call_operand.hbm [shape: f32[8,256], index: 1, kind: input, shape index: {}]
  %s2 = inlined_call_operand.hbm [shape: f32[1,1,1], index: 2, kind: output, shape index: {}]
  %s3 = sld [smem:[#allocation0]]
  $region34: #{tpu_custom_call.1} parent=0
    _
  %s5 = ssub.s32 1, %s3
  %s6 = scalar_select 0, %s5, %s3
  $region1: #{tpu_custom_call.1} parent=0
    #allocation3 [shape = 'u8[8192]{0}', space=vmem, size = 0x2000, scoped, tag = 'input window, operand 0, single buffered']
    #allocation4 [shape = 's32[1]{0}', space=sflag, size = 0x4, scoped, tag = 'scoped memory for tpu_custom_call.1']
    #allocation5 [shape = 's32[1]{0}', space=sflag, size = 0x4, scoped, tag = 'scoped memory for tpu_custom_call.1']
    #allocation6 [shape = 'u8[8192]{0}', space=vmem, size = 0x2000, scoped, tag = 'input window, operand 1, single buffered']
    #allocation7 [shape = 's32[1]{0}', space=sflag, size = 0x4, scoped, tag = 'scoped memory for tpu_custom_call.1']
    #allocation8 [shape = 'u8[512]{0}', space=vmem, size = 0x400, scoped, tag = 'output window, operand 0, single buffered']
    %7 = vsyncpa [#allocation4], 0
    %8 = vsyncpa [#allocation7], 0
    %9 = vsyncpa [#allocation5], 0
    // Predicated region
    $region2: #{tpu_custom_call.1} parent=1 // pred_check
      _
    $region3: #{tpu_custom_call.1} parent=1 // pred_check_branch
      %11 = sbr.rel (0) target = $region5
    $region4: #{tpu_custom_call.1} parent=1 // pred_region
      %s12 = sadd.s32 0, 0
      %s14 = ssub.s32 256, 256
      %15 = vsyncadd [#allocation4], %s14
      %s16 = smul.addr %s12, 2
      %s17 = smul.addr %s16, 128
      %s18 = scalar_lea.hbm %s0, %s17
      %s20 = sshll.u32 [#allocation3], 4
      %s21 = int_to_ptr.vmem [resolvable:$true] %s20
      %23 = dma.hbm_to_vmem [thread:$0]  %s18, 256, %s21, [#allocation4]
    $region5: #{tpu_custom_call.1} parent=1 // pred_fallthru
      _
    // Predicated region
    $region6: #{tpu_custom_call.1} parent=1 // pred_check
      _
    $region7: #{tpu_custom_call.1} parent=1 // pred_check_branch
      %25 = sbr.rel (0) target = $region9
    $region8: #{tpu_custom_call.1} parent=1 // pred_region
      %s26 = sadd.s32 0, 0
      %s28 = ssub.s32 256, 256
      %29 = vsyncadd [#allocation7], %s28
      %s30 = smul.addr %s26, 2
      %s31 = smul.addr %s30, 128
      %s32 = scalar_lea.hbm %s1, %s31
      %s34 = sshll.u32 [#allocation6], 4
      %s35 = int_to_ptr.vmem [resolvable:$true] %s34
      %37 = dma.hbm_to_vmem [thread:$0]  %s32, 256, %s35, [#allocation7]
    $region9: #{tpu_custom_call.1} parent=1 // pred_fallthru
      _
    // Predicated region
    $region10: #{tpu_custom_call.1} parent=1 // pred_check
      _
    $region11: #{tpu_custom_call.1} parent=1 // pred_check_branch
      %39 = sbr.rel (0) target = $region13
    $region12: #{tpu_custom_call.1} parent=1 // pred_region
      %40 = dma.done [#allocation4], 256
    $region13: #{tpu_custom_call.1} parent=1 // pred_fallthru
      _
    // Predicated region
    $region14: #{tpu_custom_call.1} parent=1 // pred_check
      _
    $region15: #{tpu_custom_call.1} parent=1 // pred_check_branch
      %42 = sbr.rel (0) target = $region17
    $region16: #{tpu_custom_call.1} parent=1 // pred_region
      %43 = dma.done [#allocation7], 256
    $region17: #{tpu_custom_call.1} parent=1 // pred_fallthru
      _
    %s44 = sadd.s32 0, 0
    %s45 = sadd.s32 0, 0
    %p46 = scmp.eq.s32.totalorder 0, 0
    // Predicated region
    $region18: #{tpu_custom_call.1} parent=1 // pred_check
      %p47 = pneg %p46
    $region19: #{tpu_custom_call.1} parent=1 // pred_check_branch
      %49 = sbr.rel (%p47) target = $region21
    $region20: #{tpu_custom_call.1} parent=1 // pred_region
      %vm50 = vcmask 0
      %51 = vst.msk [vmem:[#allocation2] sm:$0x1] %vm50, 0.0
    $region21: #{tpu_custom_call.1} parent=1 // pred_fallthru
      _
    %v52 = vld [vmem:[#allocation6] sm:$0xff]
    %v53 = vld [vmem:[#allocation6 + $0x8] sm:$0xff]
    %v54 = vmul.f32 %v52, 0.25
    %v55 = vmul.f32 %v53, 0.25
    %v56 = vld [vmem:[#allocation3] sm:$0xff]
    %v57 = vld [vmem:[#allocation3 + $0x8] sm:$0xff]
    %v58 = vmul.f32 %v56, 0.25
    %v59 = vmul.f32 %v57, 0.25
    %v60 = vmax.f32 %v54, %v55
    %61 = vmax.xlane.f32.xlu0 %v60
    %v62 = vpop.xlane.xlu0 %61
    %v63 = vmax.f32 %v58, %v59
    %64 = vmax.xlane.f32.xlu0 %v63
    %v65 = vpop.xlane.xlu0 %64
    %v66 = vsub.f32 %v54, %v62
    %v67 = vsub.f32 %v55, %v62
    %v68 = vsub.f32 %v58, %v65
    %v69 = vsub.f32 %v59, %v65
    %v70 = vmul.f32 %v66, 1.442695
    %v71 = vpow.pop %v70
    %v72 = vmul.f32 %v67, 1.442695
    %v73 = vpow.pop %v72
    %v74 = vadd.f32 %v71, %v73
    %75 = vadd.xlane.f32.xlu0 %v74
    %v76 = vpop.xlane.xlu0 %75
    %v77 = vmul.f32 %v68, 1.442695
    %v78 = vpow.pop %v77
    %v79 = vmul.f32 %v69, 1.442695
    %v80 = vpow.pop %v79
    %v81 = vadd.f32 %v78, %v80
    %82 = vadd.xlane.f32.xlu0 %v81
    %v83 = vpop.xlane.xlu0 %82
    %v84 = vsub.f32 %v66, %v68
    %v85 = vsub.f32 %v67, %v69
    %v86 = vmul.f32 %v71, %v84
    %v87 = vmul.f32 %v73, %v85
    %v88 = vadd.f32 %v86, %v87
    %89 = vadd.xlane.f32.xlu0 %v88
    %v90 = vpop.xlane.xlu0 %89
    %v91 = vrcp.pop %v76
    %v92 = vmul.f32 %v90, %v91
    %v93 = vlog2.pop %v83
    %v94 = vmul.f32 %v93, 0.6931472
    %v95 = vadd.f32 %v92, %v94
    %v96 = vlog2.pop %v76
    %v97 = vmul.f32 %v96, 0.6931472
    %v98 = vsub.f32 %v95, %v97
    %v99 = vld [vmem:[#allocation2] sm:$0x1]
    %vm100 = vcmask 7168
    %v101 = vsel %vm100, %v98, 0.0
    %102 = vadd.xlane.f32.xlu0 %v101
    %v103 = vpop.xlane.xlu0 %102
    %v104 = vrot.slane %v103, 4
    %v105 = vadd.f32 %v103, %v104
    %v106 = vrot.slane %v105, 2
    %v107 = vadd.f32 %v105, %v106
    %v108 = vrot.slane %v107, 1
    %v109 = vadd.f32 %v107, %v108
    %s110 = vtos %v109
    %v111 = vstv %s110
    %v112 = vadd.f32 %v99, %v111
    %vm113 = vcmask 0
    %114 = vst.msk [vmem:[#allocation2] sm:$0x1] %vm113, %v112
    // Predicated region
    $region22: #{tpu_custom_call.1} parent=1 // pred_check
      %p115 = pneg %p46
    $region23: #{tpu_custom_call.1} parent=1 // pred_check_branch
      %117 = sbr.rel (%p115) target = $region25
    $region24: #{tpu_custom_call.1} parent=1 // pred_region
      %v118 = vld [vmem:[#allocation2] sm:$0x1]
      %119 = vst.msk [vmem:[#allocation8] sm:$0x1] %vm113, %v118
    $region25: #{tpu_custom_call.1} parent=1 // pred_fallthru
      _
    // Predicated region
    $region26: #{tpu_custom_call.1} parent=1 // pred_check
      _
    $region27: #{tpu_custom_call.1} parent=1 // pred_check_branch
      %121 = sbr.rel (0) target = $region29
    $region28: #{tpu_custom_call.1} parent=1 // pred_region
      %s123 = ssub.s32 16, 16
      %124 = vsyncadd [#allocation5], %s123
      %s126 = sshll.u32 [#allocation8], 4
      %s127 = int_to_ptr.vmem [resolvable:$true] %s126
      %129 = dma.vmem_to_hbm [thread:$0]  %s127, 16, %s2, [#allocation5]
    $region29: #{tpu_custom_call.1} parent=1 // pred_fallthru
      _
    // Predicated region
    $region30: #{tpu_custom_call.1} parent=1 // pred_check
      _
    $region31: #{tpu_custom_call.1} parent=1 // pred_check_branch
      %131 = sbr.rel (0) target = $region33
    $region32: #{tpu_custom_call.1} parent=1 // pred_region
      %132 = dma.done [#allocation5], 16
    $region33: #{tpu_custom_call.1} parent=1 // pred_fallthru
      _
    %133 = vsyncpa [#allocation4], 1
    %134 = vsyncpa [#allocation7], 1
    %135 = vsyncpa [#allocation5], 1

</llo_original>
